<compile_context>
chip_gen: v7x
topology: tpu7x:2x2x1
jax: 0.10.0
libtpu: 0.0.40
codegen_flags: <defaults>
</compile_context>

<pallas_src>
import jax
import jax.numpy as jnp
from jax.experimental import pallas as pl
from jax.experimental.pallas import tpu as pltpu


# ----------------------------- Pallas kernels -----------------------------

def _make_invconv1x1_kernel(bn):
    """Kernel for one (batch-block, pixel-tile) grid step:  o = W @ x (f32).

    x_ref: (bn, Cin, T)  float32 activation block
    w_ref: (Cout, Cin)   float32 weight (resident; same block every step)
    o_ref: (bn, Cout, T) float32 output block
    """
    if bn == 1:
        def kernel(x_ref, w_ref, o_ref):
            o_ref[0] = jnp.dot(
                w_ref[...], x_ref[0],
                preferred_element_type=jnp.float32).astype(o_ref.dtype)
    else:
        def kernel(x_ref, w_ref, o_ref):
            # jnp.dot is not batched; einsum keeps pixels on the lane axis.
            o_ref[...] = jnp.einsum(
                'oc,bct->bot', w_ref[...], x_ref[...],
                preferred_element_type=jnp.float32).astype(o_ref.dtype)
    return kernel


# ----------------------------- tiling helpers -----------------------------

def _round_up(v, m):
    return (v + m - 1) // m * m


def _chip_params():
    """(vmem_limit_cap_bytes, target_block_bytes) per TPU generation."""
    try:
        vmem_phys = int(pltpu.get_tpu_info().vmem_capacity_bytes)
    except Exception:
        vmem_phys = 64 << 20  # conservative (v7x-sized) fallback
    if vmem_phys <= (64 << 20):
        # v7x: 64 MiB physical -> keep comfortable headroom.
        return 38 << 20, 3 << 20
    # v5e / v6e: 128 MiB physical -> allow bigger blocks.
    return 96 << 20, 4 << 20


def _pick_tiles(n, c, hw, target_bytes):
    """Pick (bn, thw) so one f32 activation block is ~target_bytes, tiling is
    exact and lane-dense, and the parallel grid keeps >= 2 steps when possible
    (v7x megacore)."""
    bytes_per_lane_col = 4 * c  # f32 bytes per pixel column of one batch row

    # --- pixel tile ---
    if hw % 128 != 0:
        # Odd spatial size: take the full axis (masked tail stores; perf hazard
        # only for unusual shapes).
        thw = hw
    else:
        max_lanes = max(128, (target_bytes // bytes_per_lane_col) // 128 * 128)
        if hw <= max_lanes:
            thw = hw
        else:
            thw = max_lanes
            while hw % thw != 0:
                thw -= 128

    # --- batch fold: grow per-step bytes when a full-hw tile is still small ---
    bn = 1
    block_bytes = bytes_per_lane_col * thw
    if thw == hw:
        while (bn < n
               and n % (bn * 2) == 0
               and block_bytes * 2 <= target_bytes
               and (n // (bn * 2)) * (hw // thw) >= 2):
            bn *= 2
            block_bytes *= 2
    return bn, thw


# ------------------------------ forward pass ------------------------------

def inv_conv2d_forward(x, weight):
    """Forward pass of InvConv2d.

    x:      (N, C, H, W) float32
    weight: (C, C, 1, 1) float32 (orthogonal 1x1 conv kernel)
    returns (out (N, C, H, W) float32, logdet scalar float32)
    """
    n, c, h, w = x.shape
    cout = weight.shape[0]
    w2 = weight.reshape(cout, c)            # squeeze 1x1 taps -> (Cout, Cin), f32

    hw = h * w
    x3 = x.reshape(n, c, hw)                # free reshape, stays contiguous

    vmem_cap, target_block_bytes = _chip_params()
    bn, thw = _pick_tiles(n, c, hw, target_block_bytes)
    grid = (n // bn, hw // thw)

    # VMEM need with (8,128) padding: double-buffered in/out blocks + weight.
    thw_pad = _round_up(thw, 128)
    in_block = bn * _round_up(c, 8) * thw_pad * 4
    out_block = bn * _round_up(cout, 8) * thw_pad * 4
    w_block = _round_up(cout, 8) * _round_up(c, 128) * 4
    vmem_need = 2 * in_block + 2 * out_block + 2 * w_block + (2 << 20)
    vmem_limit = int(min(max(vmem_need, 4 << 20), vmem_cap))

    out = pl.pallas_call(
        _make_invconv1x1_kernel(bn),
        out_shape=jax.ShapeDtypeStruct((n, cout, hw), jnp.float32),
        grid=grid,
        in_specs=[
            pl.BlockSpec((bn, c, thw), lambda i, j: (i, 0, j)),   # activations
            pl.BlockSpec((cout, c), lambda i, j: (0, 0)),         # resident weight
        ],
        out_specs=pl.BlockSpec((bn, cout, thw), lambda i, j: (i, 0, j)),
        compiler_params=pltpu.CompilerParams(
            dimension_semantics=("parallel", "parallel"),
            vmem_limit_bytes=vmem_limit,
        ),
    )(x3, w2)

    out = out.reshape(n, cout, h, w)

    # TODO(synk): torch computes slogdet in float64; JAX default is float32
    # here. The (C, C) slogdet is tiny scalar linear algebra, kept in plain JAX.
    logdet = (h * w) * jnp.linalg.slogdet(w2)[1]
    return out, logdet


# ----------------------------------- main -----------------------------------

if __name__ == "__main__":
    key = jax.random.PRNGKey(0)
    kw, kx = jax.random.split(key)

    B, C, H, W = 2, 4, 16, 16

    # Match the PyTorch init: random matrix -> QR -> orthogonal 1x1 conv weight.
    w0 = jax.random.normal(kw, (C, C), jnp.float32)
    q, _ = jnp.linalg.qr(w0)
    weight = q.reshape(C, C, 1, 1).astype(jnp.float32)

    x = jax.random.normal(kx, (B, C, H, W), jnp.float32)

    fwd = jax.jit(inv_conv2d_forward)
    out, logdet = fwd(x, weight)
    jax.block_until_ready((out, logdet))

    # Sanity checks against a plain-JAX reference (full f32 path => tight tol).
    ref = jnp.einsum("oc,nchw->nohw", weight.reshape(C, C), x)
    err = float(jnp.max(jnp.abs(out - ref)))
    ref_logdet = (H * W) * jnp.linalg.slogdet(weight.reshape(C, C))[1]

    assert out.shape == (B, C, H, W)
    assert out.dtype == jnp.float32
    assert err < 1e-5, f"max abs error {err}"
    assert bool(jnp.isfinite(logdet))
    assert abs(float(logdet - ref_logdet)) < 1e-3
    assert bool(jnp.all(jnp.isfinite(out)))

    print("KERNEL_OK")
</pallas_src>

<mosaic_0001>
module attributes {stable_mosaic.version = 11 : i64} {
  func.func @kernel(%arg0: i32, %arg1: i32, %arg2: memref<1x4x256xf32, #tpu.memory_space<vmem>>, %arg3: memref<4x4xf32, #tpu.memory_space<vmem>>, %arg4: memref<1x4x256xf32, #tpu.memory_space<vmem>>) attributes {dimension_semantics = [#tpu.dimension_semantics<parallel>, #tpu.dimension_semantics<parallel>], iteration_bounds = array<i64: 2, 1>, scalar_prefetch = 0 : i64, scratch_operands = 0 : i64, tpu.core_type = #tpu.core_type<tc>, window_params = [{transform_indices = @transform_0, window_bounds = array<i64: 1, 4, 256>}, {pipeline_mode = #tpu.pipeline_mode<synchronous>, transform_indices = @transform_1, window_bounds = array<i64: 4, 4>}, {transform_indices = @transform_2, window_bounds = array<i64: 1, 4, 256>}]} {
    %c0 = arith.constant 0 : index
    %c0_0 = arith.constant 0 : index
    %0 = vector.load %arg3[%c0, %c0_0] : memref<4x4xf32, #tpu.memory_space<vmem>>, vector<4x4xf32>
    %c0_1 = arith.constant 0 : index
    %c0_2 = arith.constant 0 : index
    %c0_3 = arith.constant 0 : index
    %1 = vector.load %arg2[%c0_1, %c0_2, %c0_3] : memref<1x4x256xf32, #tpu.memory_space<vmem>>, vector<1x4x256xf32>
    %2 = vector.shape_cast %1 : vector<1x4x256xf32> to vector<4x256xf32>
    %cst = arith.constant dense<0.000000e+00> : vector<4x256xf32>
    %3 = tpu.matmul %0, %2, %cst {dimension_numbers = #tpu.dot_dimension_numbers<[1], [0], [0], [1], [0, 0, 1, 1], [], []>} : vector<4x4xf32>, vector<4x256xf32>, vector<4x256xf32> -> vector<4x256xf32>
    %c0_4 = arith.constant 0 : index
    %c0_5 = arith.constant 0 : index
    %c0_6 = arith.constant 0 : index
    %4 = vector.load %arg4[%c0_4, %c0_5, %c0_6] : memref<1x4x256xf32, #tpu.memory_space<vmem>>, vector<1x4x256xf32>
    %5 = vector.shape_cast %4 : vector<1x4x256xf32> to vector<4x256xf32>
    %6 = vector.shape_cast %3 : vector<4x256xf32> to vector<1x4x256xf32>
    tpu.vector_store %arg4[%c0_4, %c0_5, %c0_6], %6 {strides = array<i32>} : memref<1x4x256xf32, #tpu.memory_space<vmem>>, vector<1x4x256xf32>,
    return
  }
  func.func @transform_0(%arg0: i32, %arg1: i32) -> (i32, i32, i32) {
    %c0_i32 = arith.constant 0 : i32
    %c0_i32_0 = arith.constant 0 : i32
    return %arg0, %c0_i32, %arg1 : i32, i32, i32
  }
  func.func @transform_1(%arg0: i32, %arg1: i32) -> (i32, i32) {
    %c0_i32 = arith.constant 0 : i32
    %c0_i32_0 = arith.constant 0 : i32
    %c0_i32_1 = arith.constant 0 : i32
    return %c0_i32, %c0_i32_0 : i32, i32
  }
  func.func @transform_2(%arg0: i32, %arg1: i32) -> (i32, i32, i32) {
    %c0_i32 = arith.constant 0 : i32
    %c0_i32_0 = arith.constant 0 : i32
    return %arg0, %c0_i32, %arg1 : i32, i32, i32
  }
}

</mosaic_0001>

<llo_original>
// kernel: custom-call.2
$region0: #{custom-call.2}
  %s0 = inlined_call_operand.vmem [shape: f32[4,4], index: 0, kind: input, shape index: {}]
  %s1 = inlined_call_operand.vmem [shape: f32[4,4], index: 1, kind: output, shape index: {0}]
  %s2 = inlined_call_operand.hbm [shape: s32[4], index: 2, kind: output, shape index: {1}]
  %s3 = inlined_call_operand.hbm [shape: s32[4], index: 3, kind: output, shape index: {2}]
  %4 = xla_tuple %s1, %s2, %s3
  $region1: #{custom-call.2} parent=0
    #allocation0 [shape = 'u8[4096]{0}', space=vmem, size = 0x1000, scoped, tag = 'operand span for operand 0']
    #allocation1 [shape = 'u8[2048]{0}', space=vmem, size = 0x800, scoped, tag = 'packed  for operand 0']
    #allocation2 [shape = 'u8[4096]{0}', space=vmem, size = 0x1000, scoped, tag = 'operand span for operand 1']
    #allocation3 [shape = 'u8[2048]{0}', space=vmem, size = 0x800, scoped, tag = 'packed  for operand 1']
    #allocation4 [shape = 'u8[4096]{0}', space=vmem, size = 0x1000, scoped, tag = 'operand span for operand 2']
    #allocation5 [shape = 'u8[512]{0}', space=vmem, size = 0x400, scoped, tag = 'packed  for operand 2']
    #allocation6 [shape = 's32[1]{0}', space=sflag, size = 0x4, scoped, tag = 'scoped memory for custom-call.2']
    #allocation7 [shape = 'u8[4096]{0}', space=vmem, size = 0x1000, scoped, tag = 'operand span for operand 3']
    #allocation8 [shape = 'u8[512]{0}', space=vmem, size = 0x400, scoped, tag = 'packed  for operand 3']
    #allocation9 [shape = 's32[1]{0}', space=sflag, size = 0x4, scoped, tag = 'scoped memory for custom-call.2']
    #allocation10 [shape = 's32[4,128]{1,0}', space=vmem, size = 0x1000, scoped, tag = 'scratch for permutations']
    %5 = vsyncpa [#allocation6], 0
    %6 = vsyncpa [#allocation9], 0
    %p8 = scmp.gt.s32.totalorder 4, 0
    // Predicated region
    $region2: #{custom-call.2} parent=1 // pred_check
      %p9 = pneg %p8
    $region3: #{custom-call.2} parent=1 // pred_check_branch
      %11 = sbr.rel (%p9) target = $region5
    $region4: #{custom-call.2} parent=1 // pred_region
      %s12 = sshra.s32 4, 3
      %p13 = scmp.gt.s32.totalorder %s12, 0
      // Predicated region
      $region6: #{custom-call.2} parent=4 // pred_check
        %p14 = pneg %p13
      $region7: #{custom-call.2} parent=4 // pred_check_branch
        %16 = sbr.rel (%p14) target = $region9
      $region8: #{custom-call.2} parent=4 // pred_region
        %s17 = ssub.s32 %s12, 1
        %s18 = smul.u32 %s17, 128
        %s19 = sshra.s32 %s18, 4
        %s20 = scalar_lea.vmem %s0, %s19
        %v21 = vld [vmem:[%s0] sm:$0xff]
        // While loop
        $region10: #{custom-call.2} parent=8 // loop_pre_header
          _
        $region11: #{custom-call.2} parent=8 // loop_header
          %s22 = sphi %s0, %s44
          %s23 = sphi [#allocation1], %s45
          %v24 = vphi %v21, %v46
          %s25 = ssub.s32 %s20, 64
          %p26 = scmp.gt.s32.totalorder %s22, %s25
        $region12: #{custom-call.2} parent=8 // loop_header_branch
          %28 = sbr.rel (%p26) target = $region16
        $region13: #{custom-call.2} parent=8 // loop_body
          %29 = vst [vmem:[%s23] sm:$0xff] %v24
          %v30 = vld [vmem:[%s22 + $0x8] sm:$0xff]
          %31 = vst [vmem:[%s23 + $0x8] sm:$0xff] %v30
          %v32 = vld [vmem:[%s22 + $0x10] sm:$0xff]
          %33 = vst [vmem:[%s23 + $0x10] sm:$0xff] %v32
          %v34 = vld [vmem:[%s22 + $0x18] sm:$0xff]
          %35 = vst [vmem:[%s23 + $0x18] sm:$0xff] %v34
          %v36 = vld [vmem:[%s22 + $0x20] sm:$0xff]
          %37 = vst [vmem:[%s23 + $0x20] sm:$0xff] %v36
          %v38 = vld [vmem:[%s22 + $0x28] sm:$0xff]
          %39 = vst [vmem:[%s23 + $0x28] sm:$0xff] %v38
          %v40 = vld [vmem:[%s22 + $0x30] sm:$0xff]
          %41 = vst [vmem:[%s23 + $0x30] sm:$0xff] %v40
          %v42 = vld [vmem:[%s22 + $0x38] sm:$0xff]
          %43 = vst [vmem:[%s23 + $0x38] sm:$0xff] %v42
        $region14: #{custom-call.2} parent=8 // loop_footer
          %s44 = scalar_lea.vmem %s22, 64
          %s45 = scalar_lea.vmem %s23, 64
          %v46 = vld [vmem:[%s22 + $0x40] sm:$0xff]
        $region15: #{custom-call.2} parent=8 // loop_footer_branch
          %47 = sbr.rel target = $region11
        $region16: #{custom-call.2} parent=8 // loop_exit
          _
        // While loop
        $region17: #{custom-call.2} parent=8 // loop_pre_header
          _
        $region18: #{custom-call.2} parent=8 // loop_header
          %s48 = sphi %s22, %s56
          %s49 = sphi %s23, %s57
          %v50 = vphi %v24, %v50
          %p51 = scmp.gt.s32.totalorder %s48, %s20
        $region19: #{custom-call.2} parent=8 // loop_header_branch
          %53 = sbr.rel (%p51) target = $region23
        $region20: #{custom-call.2} parent=8 // loop_body
          %v54 = vld [vmem:[%s48] sm:$0xff]
          %55 = vst [vmem:[%s49] sm:$0xff] %v54
        $region21: #{custom-call.2} parent=8 // loop_footer
          %s56 = scalar_lea.vmem %s48, 8
          %s57 = scalar_lea.vmem %s49, 8
        $region22: #{custom-call.2} parent=8 // loop_footer_branch
          %58 = sbr.rel target = $region18
        $region23: #{custom-call.2} parent=8 // loop_exit
          _
      $region9: #{custom-call.2} parent=4 // pred_fallthru
        _
      %s59 = sand.u32 4, 7
      %s60 = sshllo.u32 0, %s59
      %s61 = smul.u32 %s12, 128
      %s62 = sshra.s32 %s61, 4
      %s63 = scalar_lea.vmem [#allocation1], %s62
      %s64 = smul.u32 %s12, 128
      %s65 = sshra.s32 %s64, 4
      %s66 = scalar_lea.vmem %s0, %s65
      %v67 = vld [vmem:[%s66] sm:%s60]
      %68 = vst [vmem:[%s63] sm:%s60] %v67
    $region5: #{custom-call.2} parent=1 // pred_fallthru
      _
    %s70 = sshllo.u32 0, 4
    %v71 = vld [vmem:[#allocation1] sm:%s70]
    %72 = vst [vmem:[#allocation0] sm:%s70] %v71
    %v73 = vld [vmem:[#allocation0] sm:$0xff]
    %74 = vst [vmem:[#allocation2] sm:$0xff] %v73
    %75 = vst [vmem:[#allocation4] sm:$0x1] 0
    %v76 = vlaneseq
    %v77 = vshrl.u32 %v76, 7
    %v78 = vmov %v77
    %80 = vst [vmem:[#allocation10] sm:$0xff] %v78
    loop: start=0, step=1, limit=4
    $region25: #{custom-call.2} parent=1 // loop_pre_header
      _
    $region26: #{custom-call.2} parent=1 // loop_header
      %s82 = sphi 0, %s86
      %p83 = scmp.ge.s32.totalorder %s82, 4
    $region27: #{custom-call.2} parent=1 // loop_header_branch
      %85 = sbr.rel (%p83) target = $region31
    $region28: #{custom-call.2} parent=1 // loop_body
      %v87 = vstv %s82
      %v88 = vlaneseq
      %v89 = vshrl.u32 %v88, 7
      %v90 = vmov %v89
      %v91 = vld [vmem:[#allocation2] sm:$0xff]
      %v92 = vand.u32 2147483647, %v91
      %v94 = vstv %s82
      %vm95 = vcmp.ge.s32.totalorder %v90, %v94
      %vm96 = vcmp.lt.s32.totalorder %v90, 4
      %vm97 = vmand %vm95, %vm96
      %vm98 = vcmp.lt.f32.partialorder -inf, %v92
      %vm99 = vmand %vm97, %vm98
      %v100 = vsel %vm99, %v90, %v87
      %v101 = vsel %vm99, %v92, -inf
      %v102 = vrot.slane %v101, 1
      %v103 = vrot.slane %v100, 1
      %vm104 = vcmp.ge.f32.partialorder %v102, %v101
      %v105 = vsel %vm104, %v102, %v101
      %v106 = vsel %vm104, %v103, %v100
      %v107 = vrot.slane %v102, 1
      %v108 = vrot.slane %v103, 1
      %vm109 = vcmp.ge.f32.partialorder %v107, %v105
      %v110 = vsel %vm109, %v107, %v105
      %v111 = vsel %vm109, %v108, %v106
      %v112 = vrot.slane %v107, 1
      %v113 = vrot.slane %v108, 1
      %vm114 = vcmp.ge.f32.partialorder %v112, %v110
      %v115 = vsel %vm114, %v112, %v110
      %v116 = vsel %vm114, %v113, %v111
      %v117 = vrot.slane %v112, 1
      %v118 = vrot.slane %v113, 1
      %vm119 = vcmp.ge.f32.partialorder %v117, %v115
      %v120 = vsel %vm119, %v117, %v115
      %v121 = vsel %vm119, %v118, %v116
      %v122 = vrot.slane %v117, 1
      %v123 = vrot.slane %v118, 1
      %vm124 = vcmp.ge.f32.partialorder %v122, %v120
      %v125 = vsel %vm124, %v122, %v120
      %v126 = vsel %vm124, %v123, %v121
      %v127 = vrot.slane %v122, 1
      %v128 = vrot.slane %v123, 1
      %vm129 = vcmp.ge.f32.partialorder %v127, %v125
      %v130 = vsel %vm129, %v127, %v125
      %v131 = vsel %vm129, %v128, %v126
      %v132 = vrot.slane %v127, 1
      %v133 = vrot.slane %v128, 1
      %vm134 = vcmp.ge.f32.partialorder %v132, %v130
      %v135 = vsel %vm134, %v132, %v130
      %v136 = vsel %vm134, %v133, %v131
      %s137 = ssub.s32 128, %s82
      %138 = vrot.lane.b32.xlu0 %v136, %s137
      %v139 = vpop.permute.xlu0 %138
      %s140 = vtos %v139
      %v141 = vstv %s82
      %v142 = vlaneseq
      %v143 = vand.u32 %v142, 127
      %vm144 = vcmp.eq.s32.totalorder %v143, %v141
      %v145 = vstv %s140
      %v146 = vld [vmem:[#allocation4] ss:$0 sm:$0xff]
      %v147 = vsel %vm144, %v145, %v146
      %148 = vst [vmem:[#allocation4] sm:$0x1] %v147
      %s149 = scalar_lea.vmem [#allocation2], %s82
      %s150 = scalar_lea.vmem [#allocation2], %s140
      %v151 = vld [vmem:[%s149] ss:$0 sm:$0xff]
      %v152 = vld [vmem:[%s150] ss:$0 sm:$0xff]
      %153 = vst [vmem:[%s150] sm:$0x1] %v151
      %154 = vst [vmem:[%s149] sm:$0x1] %v152
      %s155 = scalar_lea.vmem [#allocation10], %s82
      %s156 = scalar_lea.vmem [#allocation10], %s140
      %v157 = vld [vmem:[%s155] ss:$0 sm:$0xff]
      %v158 = vld [vmem:[%s156] ss:$0 sm:$0xff]
      %159 = vst [vmem:[%s156] sm:$0x1] %v157
      %160 = vst [vmem:[%s155] sm:$0x1] %v158
      %vm161 = vcmp.ne.f32.partialorder %v152, 0.0
      %vm162 = vmand %vm144, %vm161
      %v163 = vsel %vm162, %v152, 1.0
      %v164 = vlaneseq
      %v165 = vand.u32 %v164, 127
      %v166 = vstv %s82
      %vm167 = vcmp.gt.s32.totalorder %v165, %v166
      %v168 = vsel %vm167, %v152, 0.0
      %v169 = vlaneseq
      %v170 = vshrl.u32 %v169, 7
      %v171 = vmov %v170
      %v172 = vld [vmem:[#allocation2] sm:$0xff]
      %v174 = vstv %s82
      %vm175 = vcmp.gt.s32.totalorder %v171, %v174
      %v176 = vsel %vm175, %v163, 1.0
      %v177 = vrcp.pop %v176
      %v178 = vmul.f32 %v172, %v177
      %vm179 = vmand %vm175, %vm144
      %v180 = vsel %vm179, %v178, 0.0
      %181 = vadd.xlane.f32.xlu0 %v180
      %v182 = vpop.xlane.xlu0 %181
      %v183 = vmul.f32 %v182, %v168
      %v184 = vsub.f32 %v178, %v183
      %185 = vst [vmem:[#allocation2] sm:$0xff] %v184
    $region29: #{custom-call.2} parent=1 // loop_footer
      %s86 = sadd.s32 1, %s82
    $region30: #{custom-call.2} parent=1 // loop_footer_branch
      %81 = sbr.rel target = $region26
    $region31: #{custom-call.2} parent=1 // loop_exit
      _
    %v186 = vld [vmem:[#allocation10] sm:$0xff]
    %s187 = scalar_lea.vmem [#allocation10], 8
    %s188 = scalar_lea.vmem [#allocation10], 16
    %s189 = scalar_lea.vmem [#allocation10], 24
    %s190 = scalar_lea.vmem [#allocation10], 32
    %s191 = scalar_lea.vmem [#allocation10], 40
    %s192 = scalar_lea.vmem [#allocation10], 48
    %s193 = scalar_lea.vmem [#allocation10], 56
    %s194 = scalar_lea.vmem [#allocation10], 64
    %s195 = scalar_lea.vmem [#allocation10], 72
    %s196 = scalar_lea.vmem [#allocation10], 80
    %s197 = scalar_lea.vmem [#allocation10], 88
    %s198 = scalar_lea.vmem [#allocation10], 96
    %s199 = scalar_lea.vmem [#allocation10], 104
    %s200 = scalar_lea.vmem [#allocation10], 112
    %s201 = scalar_lea.vmem [#allocation10], 120
    %202 = vxpose.xlu0.b32.start [1/16] %v186, 128
    %203 = vxpose.xlu0.b32.cont [2/16] 0, 128
    %204 = vxpose.xlu0.b32.cont [3/16] 0, 128
    %205 = vxpose.xlu0.b32.cont [4/16] 0, 128
    %206 = vxpose.xlu0.b32.cont [5/16] 0, 128
    %207 = vxpose.xlu0.b32.cont [6/16] 0, 128
    %208 = vxpose.xlu0.b32.cont [7/16] 0, 128
    %209 = vxpose.xlu0.b32.cont [8/16] 0, 128
    %210 = vxpose.xlu0.b32.cont [9/16] 0, 128
    %211 = vxpose.xlu0.b32.cont [10/16] 0, 128
    %212 = vxpose.xlu0.b32.cont [11/16] 0, 128
    %213 = vxpose.xlu0.b32.cont [12/16] 0, 128
    %214 = vxpose.xlu0.b32.cont [13/16] 0, 128
    %215 = vxpose.xlu0.b32.cont [14/16] 0, 128
    %216 = vxpose.xlu0.b32.cont [15/16] 0, 128
    %217 = vxpose.xlu0.b32.end [16/16] 0, 128
    %v218 = vpop.trf.xlu0
    %v219 = vpop.trf.xlu0
    %v220 = vpop.trf.xlu0
    %v221 = vpop.trf.xlu0
    %v222 = vpop.trf.xlu0
    %v223 = vpop.trf.xlu0
    %v224 = vpop.trf.xlu0
    %v225 = vpop.trf.xlu0
    %v226 = vpop.trf.xlu0
    %v227 = vpop.trf.xlu0
    %v228 = vpop.trf.xlu0
    %v229 = vpop.trf.xlu0
    %v230 = vpop.trf.xlu0
    %v231 = vpop.trf.xlu0
    %v232 = vpop.trf.xlu0
    %v233 = vpop.trf.xlu0
    %234 = vst [vmem:[#allocation7] sm:$0x1] %v218
    %s236 = sshllo.u32 0, 4
    %v238 = vld [vmem:[#allocation2] sm:%s236]
    %s239 = sshllo.u32 0, 4
    %240 = vst [vmem:[#allocation3] sm:%s239] %v238
    %s242 = sshllo.u32 0, 1
    %v244 = vld [vmem:[#allocation4] sm:%s242]
    %s245 = sshllo.u32 0, 1
    %246 = vst [vmem:[#allocation5] sm:%s245] %v244
    %s248 = sshllo.u32 0, 1
    %v250 = vld [vmem:[#allocation7] sm:%s248]
    %s251 = sshllo.u32 0, 1
    %252 = vst [vmem:[#allocation8] sm:%s251] %v250
    %p254 = scmp.gt.s32.totalorder 4, 0
    // Predicated region
    $region32: #{custom-call.2} parent=1 // pred_check
      %p255 = pneg %p254
    $region33: #{custom-call.2} parent=1 // pred_check_branch
      %257 = sbr.rel (%p255) target = $region35
    $region34: #{custom-call.2} parent=1 // pred_region
      %s258 = sshra.s32 4, 3
      %p259 = scmp.gt.s32.totalorder %s258, 0
      // Predicated region
      $region36: #{custom-call.2} parent=34 // pred_check
        %p260 = pneg %p259
      $region37: #{custom-call.2} parent=34 // pred_check_branch
        %262 = sbr.rel (%p260) target = $region39
      $region38: #{custom-call.2} parent=34 // pred_region
        %s263 = ssub.s32 %s258, 1
        %s264 = smul.u32 %s263, 128
        %s265 = sshra.s32 %s264, 4
        %s266 = scalar_lea.vmem [#allocation3], %s265
        %v267 = vld [vmem:[#allocation3] sm:$0xff]
        // While loop
        $region40: #{custom-call.2} parent=38 // loop_pre_header
          _
        $region41: #{custom-call.2} parent=38 // loop_header
          %s268 = sphi [#allocation3], %s290
          %s269 = sphi %s1, %s291
          %v270 = vphi %v267, %v292
          %s271 = ssub.s32 %s266, 64
          %p272 = scmp.gt.s32.totalorder %s268, %s271
        $region42: #{custom-call.2} parent=38 // loop_header_branch
          %274 = sbr.rel (%p272) target = $region46
        $region43: #{custom-call.2} parent=38 // loop_body
          %275 = vst [vmem:[%s269] sm:$0xff] %v270
          %v276 = vld [vmem:[%s268 + $0x8] sm:$0xff]
          %277 = vst [vmem:[%s269 + $0x8] sm:$0xff] %v276
          %v278 = vld [vmem:[%s268 + $0x10] sm:$0xff]
          %279 = vst [vmem:[%s269 + $0x10] sm:$0xff] %v278
          %v280 = vld [vmem:[%s268 + $0x18] sm:$0xff]
          %281 = vst [vmem:[%s269 + $0x18] sm:$0xff] %v280
          %v282 = vld [vmem:[%s268 + $0x20] sm:$0xff]
          %283 = vst [vmem:[%s269 + $0x20] sm:$0xff] %v282
          %v284 = vld [vmem:[%s268 + $0x28] sm:$0xff]
          %285 = vst [vmem:[%s269 + $0x28] sm:$0xff] %v284
          %v286 = vld [vmem:[%s268 + $0x30] sm:$0xff]
          %287 = vst [vmem:[%s269 + $0x30] sm:$0xff] %v286
          %v288 = vld [vmem:[%s268 + $0x38] sm:$0xff]
          %289 = vst [vmem:[%s269 + $0x38] sm:$0xff] %v288
        $region44: #{custom-call.2} parent=38 // loop_footer
          %s290 = scalar_lea.vmem %s268, 64
          %s291 = scalar_lea.vmem %s269, 64
          %v292 = vld [vmem:[%s268 + $0x40] sm:$0xff]
        $region45: #{custom-call.2} parent=38 // loop_footer_branch
          %293 = sbr.rel target = $region41
        $region46: #{custom-call.2} parent=38 // loop_exit
          _
        // While loop
        $region47: #{custom-call.2} parent=38 // loop_pre_header
          _
        $region48: #{custom-call.2} parent=38 // loop_header
          %s294 = sphi %s268, %s302
          %s295 = sphi %s269, %s303
          %v296 = vphi %v270, %v296
          %p297 = scmp.gt.s32.totalorder %s294, %s266
        $region49: #{custom-call.2} parent=38 // loop_header_branch
          %299 = sbr.rel (%p297) target = $region53
        $region50: #{custom-call.2} parent=38 // loop_body
          %v300 = vld [vmem:[%s294] sm:$0xff]
          %301 = vst [vmem:[%s295] sm:$0xff] %v300
        $region51: #{custom-call.2} parent=38 // loop_footer
          %s302 = scalar_lea.vmem %s294, 8
          %s303 = scalar_lea.vmem %s295, 8
        $region52: #{custom-call.2} parent=38 // loop_footer_branch
          %304 = sbr.rel target = $region48
        $region53: #{custom-call.2} parent=38 // loop_exit
          _
      $region39: #{custom-call.2} parent=34 // pred_fallthru
        _
      %s305 = sand.u32 4, 7
      %s306 = sshllo.u32 0, %s305
      %s307 = smul.u32 %s258, 128
      %s308 = sshra.s32 %s307, 4
      %s309 = scalar_lea.vmem %s1, %s308
      %s310 = smul.u32 %s258, 128
      %s311 = sshra.s32 %s310, 4
      %s312 = scalar_lea.vmem [#allocation3], %s311
      %v313 = vld [vmem:[%s312] sm:%s306]
      %314 = vst [vmem:[%s309] sm:%s306] %v313
    $region35: #{custom-call.2} parent=1 // pred_fallthru
      _
    // Predicated region
    $region54: #{custom-call.2} parent=1 // pred_check
      _
    $region55: #{custom-call.2} parent=1 // pred_check_branch
      %316 = sbr.rel (0) target = $region57
    $region56: #{custom-call.2} parent=1 // pred_region
      %s318 = ssub.s32 16, 16
      %319 = vsyncadd [#allocation6], %s318
      %s320 = sshll.u32 [#allocation5], 4
      %s321 = int_to_ptr.vmem [resolvable:$true] %s320
      %323 = dma.vmem_to_hbm [thread:$0]  %s321, 16, %s2, [#allocation6]
    $region57: #{custom-call.2} parent=1 // pred_fallthru
      _
    // Predicated region
    $region58: #{custom-call.2} parent=1 // pred_check
      _
    $region59: #{custom-call.2} parent=1 // pred_check_branch
      %325 = sbr.rel (0) target = $region61
    $region60: #{custom-call.2} parent=1 // pred_region
      %s327 = ssub.s32 16, 16
      %328 = vsyncadd [#allocation9], %s327
      %s329 = sshll.u32 [#allocation8], 4
      %s330 = int_to_ptr.vmem [resolvable:$true] %s329
      %332 = dma.vmem_to_hbm [thread:$0]  %s330, 16, %s3, [#allocation9]
    $region61: #{custom-call.2} parent=1 // pred_fallthru
      _
    // Predicated region
    $region62: #{custom-call.2} parent=1 // pred_check
      _
    $region63: #{custom-call.2} parent=1 // pred_check_branch
      %334 = sbr.rel (0) target = $region65
    $region64: #{custom-call.2} parent=1 // pred_region
      %335 = dma.done [#allocation6], 16
    $region65: #{custom-call.2} parent=1 // pred_fallthru
      _
    // Predicated region
    $region66: #{custom-call.2} parent=1 // pred_check
      _
    $region67: #{custom-call.2} parent=1 // pred_check_branch
      %337 = sbr.rel (0) target = $region69
    $region68: #{custom-call.2} parent=1 // pred_region
      %338 = dma.done [#allocation9], 16
    $region69: #{custom-call.2} parent=1 // pred_fallthru
      _
    %339 = vsyncpa [#allocation6], 1
    %340 = vsyncpa [#allocation9], 1

// kernel: inv_conv2d_forward.1
$region0: #{inv_conv2d_forward.1}
  #allocation0 [shape = 'u32[]', space=smem, size = 0x4, offset = 0x4, fixed_abs, tag = 'smem constant byte address 0x4 - core index']
  #allocation1 [shape = 'u32[144,128]{1,0:T(1,128)}', space=vmem, size = 0x12000, scoped, tag = 'internal scratch']
  %s0 = inlined_call_operand.vmem [shape: f32[2,4,256], index: 0, kind: input, shape index: {}]
  %s1 = inlined_call_operand.vmem [shape: f32[4,4], index: 1, kind: input, shape index: {}]
  %s2 = inlined_call_operand.vmem [shape: f32[2,4,256], index: 2, kind: output, shape index: {}]
  %s3 = sld [smem:[#allocation0]]
  $region41: #{inv_conv2d_forward.1} parent=0
    _
  %s5 = ssub.s32 1, %s3
  %s6 = scalar_select 0, %s5, %s3
  loop: start=0, step=1, limit=4
  $region2: #{inv_conv2d_forward.1} parent=0 // loop_pre_header
    _
  $region3: #{inv_conv2d_forward.1} parent=0 // loop_header
    %s8 = sphi 0, %s12
    %p9 = scmp.ge.s32.totalorder %s8, 4
    %s15 = sphi 0, %s27
    %s16 = sphi 0, %s23
    %s17 = sphi 0, %s15
    %s18 = sphi 0, %s16
    %s19 = sphi 0, %s17
    %s20 = sphi 0, %s18
    %s32 = sphi 0, %s34
    %s35 = sphi 0, %s32
    %s36 = sphi 0, %s35
    %s52 = sphi 0, %s36
    %s56 = sphi 0, %s56
    %s58 = sphi 0, %s56
    %s59 = sphi 0, %s58
    %s73 = sphi 0, %s59
    %s81 = sphi 0, %s83
    %s84 = sphi 0, %s81
    %s85 = sphi 0, %s84
    %s101 = sphi 0, %s85
  $region4: #{inv_conv2d_forward.1} parent=0 // loop_header_branch
    %11 = sbr.rel (%p9) target = $region8
  $region5: #{inv_conv2d_forward.1} parent=0 // loop_body
    %s13 = ssub.s32 %s8, 1
    %s14 = ssub.s32 %s8, 2
    %s21 = sadd.s32 1, %s16
    %p22 = scmp.ge.s32.totalorder %s21, 1
    %s23 = scalar_select %p22, 0, %s21
    %s24 = sadd.s32 1, %s15
    %s25 = scalar_select %p22, %s24, %s15
    %p26 = scmp.ge.s32.totalorder %s25, 2
    %s27 = scalar_select %p26, 0, %s25
    %s28 = ssub.s32 %s15, %s27
    %s29 = ssub.s32 %s16, %s23
    %s30 = sor.u32 %s28, %s29
    %p31 = scmp.eq.s32.totalorder %s30, 0
    %s33 = sadd.s32 %s32, 1
    %s34 = scalar_select %p31, %s32, %s33
    %p37 = pneg %p31
    %p38 = scmp.eq.s32.totalorder %s8, 1
    %p39 = por %p37, %p38
    %p40 = scmp.ne.s32.totalorder %s32, %s35
    %p41 = scmp.eq.s32.totalorder %s8, 0
    %p42 = por %p40, %p41
    %p43 = scmp.ne.s32.totalorder %s32, %s35
    %p44 = scmp.eq.s32.totalorder %s13, 1
    %p45 = por %p43, %p44
    %p46 = scmp.ne.s32.totalorder %s35, %s36
    %p47 = scmp.eq.s32.totalorder %s13, 0
    %p48 = por %p46, %p47
    %p49 = scmp.ne.s32.totalorder %s35, %s36
    %p50 = scmp.eq.s32.totalorder %s14, 1
    %p51 = por %p49, %p50
    %p53 = scmp.ne.s32.totalorder %s36, %s52
    %p54 = scmp.eq.s32.totalorder %s14, 0
    %p55 = por %p53, %p54
    %s57 = sadd.s32 %s56, 1
    %p60 = scmp.eq.s32.totalorder %s8, 1
    %p61 = scmp.ne.s32.totalorder %s56, %s58
    %p62 = scmp.eq.s32.totalorder %s8, 0
    %p63 = por %p61, %p62
    %p64 = scmp.ne.s32.totalorder %s56, %s58
    %p65 = scmp.eq.s32.totalorder %s13, 1
    %p66 = por %p64, %p65
    %p67 = scmp.ne.s32.totalorder %s58, %s59
    %p68 = scmp.eq.s32.totalorder %s13, 0
    %p69 = por %p67, %p68
    %p70 = scmp.ne.s32.totalorder %s58, %s59
    %p71 = scmp.eq.s32.totalorder %s14, 1
    %p72 = por %p70, %p71
    %p74 = scmp.ne.s32.totalorder %s59, %s73
    %p75 = scmp.eq.s32.totalorder %s14, 0
    %p76 = por %p74, %p75
    %s77 = ssub.s32 %s15, %s27
    %s78 = ssub.s32 %s16, %s23
    %s79 = sor.u32 %s77, %s78
    %p80 = scmp.eq.s32.totalorder %s79, 0
    %s82 = sadd.s32 %s81, 1
    %s83 = scalar_select %p80, %s81, %s82
    %p86 = pneg %p80
    %p87 = scmp.eq.s32.totalorder %s8, 1
    %p88 = por %p86, %p87
    %p89 = scmp.ne.s32.totalorder %s81, %s84
    %p90 = scmp.eq.s32.totalorder %s8, 0
    %p91 = por %p89, %p90
    %p92 = scmp.ne.s32.totalorder %s81, %s84
    %p93 = scmp.eq.s32.totalorder %s13, 1
    %p94 = por %p92, %p93
    %p95 = scmp.ne.s32.totalorder %s84, %s85
    %p96 = scmp.eq.s32.totalorder %s13, 0
    %p97 = por %p95, %p96
    %p98 = scmp.ne.s32.totalorder %s84, %s85
    %p99 = scmp.eq.s32.totalorder %s14, 1
    %p100 = por %p98, %p99
    %p102 = scmp.ne.s32.totalorder %s85, %s101
    %p103 = scmp.eq.s32.totalorder %s14, 0
    %p104 = por %p102, %p103
    %p105 = scmp.le.s32.totalorder 1, %s8
    %p106 = scmp.lt.s32.totalorder %s8, 3
    %p107 = pnand %p105, %p106
    %p108 = pneg %p107
    // Predicated region
    $region9: #{inv_conv2d_forward.1} parent=5 // pred_check
      _
    $region10: #{inv_conv2d_forward.1} parent=5 // pred_check_branch
      %110 = sbr.rel (%p107) target = $region12
    $region11: #{inv_conv2d_forward.1} parent=5 // pred_region
      %s111 = ssub.s32 %s8, 1
      // Predicated region
      $region13: #{inv_conv2d_forward.1} parent=11 // pred_check
        %p112 = pneg %p69
      $region14: #{inv_conv2d_forward.1} parent=11 // pred_check_branch
        %114 = sbr.rel (%p112) target = $region16
      $region15: #{inv_conv2d_forward.1} parent=11 // pred_region
        _
      $region16: #{inv_conv2d_forward.1} parent=11 // pred_fallthru
        _
    $region12: #{inv_conv2d_forward.1} parent=5 // pred_fallthru
      _
    %p115 = scmp.lt.s32.totalorder %s8, 2
    // Predicated region
    $region17: #{inv_conv2d_forward.1} parent=5 // pred_check
      %p116 = pneg %p115
    $region18: #{inv_conv2d_forward.1} parent=5 // pred_check_branch
      %118 = sbr.rel (%p116) target = $region20
    $region19: #{inv_conv2d_forward.1} parent=5 // pred_region
      // Predicated region
      $region21: #{inv_conv2d_forward.1} parent=19 // pred_check
        %p119 = pneg %p42
      $region22: #{inv_conv2d_forward.1} parent=19 // pred_check_branch
        %121 = sbr.rel (%p119) target = $region24
      $region23: #{inv_conv2d_forward.1} parent=19 // pred_region
        %s122 = smul.u32 2, %s16
        %p123 = scmp.lt.s32.totalorder %s15, 1
        %s124 = scalar_select %p123, %s15, 1
        %p125 = scmp.lt.s32.totalorder %s122, 1
        %s126 = scalar_select %p125, %s122, 1
        %s127 = smul.addr %s124, 2
        %s128 = sadd.s32 %s126, %s127
        %s129 = smul.addr %s128, 4
        %s130 = scalar_lea.vmem %s0, %s129
        %s131 = smul.u32 2, %s16
      $region24: #{inv_conv2d_forward.1} parent=19 // pred_fallthru
        _
    $region20: #{inv_conv2d_forward.1} parent=5 // pred_fallthru
      _
    %p132 = scmp.le.s32.totalorder 1, %s8
    %p133 = scmp.lt.s32.totalorder %s8, 3
    %p134 = pnand %p132, %p133
    %p135 = pneg %p134
    // Predicated region
    $region25: #{inv_conv2d_forward.1} parent=5 // pred_check
      _
    $region26: #{inv_conv2d_forward.1} parent=5 // pred_check_branch
      %137 = sbr.rel (%p134) target = $region28
    $region27: #{inv_conv2d_forward.1} parent=5 // pred_region
      %s138 = ssub.s32 %s8, 1
      %s139 = smul.u32 2, %s18
      %p140 = scmp.lt.s32.totalorder %s17, 1
      %s141 = scalar_select %p140, %s17, 1
      %p142 = scmp.lt.s32.totalorder %s139, 1
      %s143 = scalar_select %p142, %s139, 1
      %s144 = smul.addr %s141, 2
      %s145 = sadd.s32 %s143, %s144
      %s146 = smul.addr %s145, 4
      %s147 = scalar_lea.vmem %s0, %s146
      %p148 = pneg %p48
      %p149 = pneg %p45
      %p150 = pneg %p69
      %p151 = pneg %p66
      %p152 = pneg %p97
      %p153 = pneg %p94
      %s154 = smul.u32 2, %s18
      %p155 = scmp.lt.s32.totalorder %s17, 1
      %s156 = scalar_select %p155, %s17, 1
      %p157 = scmp.lt.s32.totalorder %s154, 1
      %s158 = scalar_select %p157, %s154, 1
      %s159 = smul.addr %s156, 2
      %s160 = sadd.s32 %s158, %s159
      %s161 = smul.addr %s160, 4
      %s162 = scalar_lea.vmem %s2, %s161
      %s163 = smul.u32 2, %s18
      %p164 = scmp.lt.s32.totalorder %s17, 1
      %s165 = scalar_select %p164, %s17, 1
      %p166 = scmp.lt.s32.totalorder %s163, 1
      %s167 = scalar_select %p166, %s163, 1
      %s168 = smul.addr %s165, 2
      %s169 = sadd.s32 %s167, %s168
      %s170 = smul.addr %s169, 4
      %s171 = scalar_lea.vmem %s0, %s170
      %s172 = smul.u32 2, %s18
      %s173 = smul.u32 2, %s18
      %p174 = scmp.lt.s32.totalorder %s17, 1
      %s175 = scalar_select %p174, %s17, 1
      %p176 = scmp.lt.s32.totalorder %s173, 1
      %s177 = scalar_select %p176, %s173, 1
      %s178 = smul.addr %s175, 2
      %s179 = sadd.s32 %s177, %s178
      %s180 = smul.addr %s179, 4
      %s181 = scalar_lea.vmem %s2, %s180
      %s182 = smul.u32 2, %s18
      %v183 = vld [vmem:[%s1] sm:$0xf]
      %v184 = vld [vmem:[%s171] sm:$0xff]
      %v186 = vcombine.high %v184, %v184
      %vm187 = vcmask 31744
      %v189 = vsel %vm187, %v183, 0
      %vm191 = vcmask 1043456
      %v192 = vsel %vm191, %v184, 0
      %v194 = vsel %vm191, %v186, 0
      %196 = vmatprep.subr.mxu0 %v194
      %197 = vmatpush1.msra.mxu0 %v192
      %198 = vmatprep.subr.mxu0 0.0
      %199 = vmatpush1.msra.mxu0 0.0
      %200 = vmatprep.subr.mxu0 0.0
      %201 = vmatpush1.msra.mxu0 0.0
      %202 = vmatprep.subr.mxu0 0.0
      %203 = vmatpush1.msra.mxu0 0.0
      %204 = vmatprep.subr.mxu0 0.0
      %205 = vmatpush1.msra.mxu0 0.0
      %206 = vmatprep.subr.mxu0 0.0
      %207 = vmatpush1.msra.mxu0 0.0
      %208 = vmatprep.subr.mxu0 0.0
      %209 = vmatpush1.msra.mxu0 0.0
      %210 = vmatprep.subr.mxu0 0.0
      %211 = vmatpush1.msra.mxu0 0.0
      %212 = vmatprep.subr.mxu0 0.0
      %213 = vmatpush1.msra.mxu0 0.0
      %214 = vmatprep.subr.mxu0 0.0
      %215 = vmatpush1.msra.mxu0 0.0
      %216 = vmatprep.subr.mxu0 0.0
      %217 = vmatpush1.msra.mxu0 0.0
      %218 = vmatprep.subr.mxu0 0.0
      %219 = vmatpush1.msra.mxu0 0.0
      %220 = vmatprep.subr.mxu0 0.0
      %221 = vmatpush1.msra.mxu0 0.0
      %222 = vmatprep.subr.mxu0 0.0
      %223 = vmatpush1.msra.mxu0 0.0
      %224 = vmatprep.subr.mxu0 0.0
      %225 = vmatpush1.msra.mxu0 0.0
      %226 = vmatprep.subr.mxu0 0.0
      %227 = vmatpush1.msra.mxu0 0.0
      %228 = vmatprep.subr.mxu0 0.0
      %229 = vmatpush1.msra.mxu0 0.0
      %230 = vmatprep.subr.mxu0 0.0
      %231 = vmatpush1.msra.mxu0 0.0
      %232 = vmatprep.subr.mxu0 0.0
      %233 = vmatpush1.msra.mxu0 0.0
      %234 = vmatprep.subr.mxu0 0.0
      %235 = vmatpush1.msra.mxu0 0.0
      %236 = vmatprep.subr.mxu0 0.0
      %237 = vmatpush1.msra.mxu0 0.0
      %238 = vmatprep.subr.mxu0 0.0
      %239 = vmatpush1.msra.mxu0 0.0
      %240 = vmatprep.subr.mxu0 0.0
      %241 = vmatpush1.msra.mxu0 0.0
      %242 = vmatprep.subr.mxu0 0.0
      %243 = vmatpush1.msra.mxu0 0.0
      %244 = vmatprep.subr.mxu0 0.0
      %245 = vmatpush1.msra.mxu0 0.0
      %246 = vmatprep.subr.mxu0 0.0
      %247 = vmatpush1.msra.mxu0 0.0
      %248 = vmatprep.subr.mxu0 0.0
      %249 = vmatpush1.msra.mxu0 0.0
      %250 = vmatprep.subr.mxu0 0.0
      %251 = vmatpush1.msra.mxu0 0.0
      %252 = vmatprep.subr.mxu0 0.0
      %253 = vmatpush1.msra.mxu0 0.0
      %254 = vmatprep.subr.mxu0 0.0
      %255 = vmatpush1.msra.mxu0 0.0
      %256 = vmatprep.subr.mxu0 0.0
      %257 = vmatpush1.msra.mxu0 0.0
      %258 = vmatprep.subr.mxu0 0.0
      %259 = vmatpush1.msra.mxu0 0.0
      %260 = vmatprep.mubr.f32.mxu0 0.0
      %261 = vmatmul.mubr.f32.gmra.mrb[0].mxu0 %v189
      %v262 = vpop.f32.mrb[0].mxu0
      %v263 = vadd.f32 0.0, %v262
      %v264 = vpop.f32.mrb[0].mxu0
      %v265 = vadd.f32 0.0, %v264
      %266 = vdwg.mxu0
      %v269 = vcombine.low %v263, %v265
      %271 = vst [vmem:[%s181] sm:$0xff] %v269
      %s272 = smul.u32 2, %s18
      %p273 = scmp.lt.s32.totalorder %s17, 1
      %s274 = scalar_select %p273, %s17, 1
      %p275 = scmp.lt.s32.totalorder %s272, 1
      %s276 = scalar_select %p275, %s272, 1
      %s277 = smul.addr %s274, 2
      %s278 = sadd.s32 %s276, %s277
      %s279 = smul.addr %s278, 4
      %s280 = scalar_lea.vmem %s2, %s279
      // Predicated region
      $region29: #{inv_conv2d_forward.1} parent=27 // pred_check
        %p281 = pneg %p94
      $region30: #{inv_conv2d_forward.1} parent=27 // pred_check_branch
        %283 = sbr.rel (%p281) target = $region32
      $region31: #{inv_conv2d_forward.1} parent=27 // pred_region
        %s284 = smul.u32 2, %s18
      $region32: #{inv_conv2d_forward.1} parent=27 // pred_fallthru
        _
    $region28: #{inv_conv2d_forward.1} parent=5 // pred_fallthru
      _
    %p285 = scmp.le.s32.totalorder 2, %s8
    // Predicated region
    $region33: #{inv_conv2d_forward.1} parent=5 // pred_check
      %p286 = pneg %p285
    $region34: #{inv_conv2d_forward.1} parent=5 // pred_check_branch
      %288 = sbr.rel (%p286) target = $region36
    $region35: #{inv_conv2d_forward.1} parent=5 // pred_region
      %s289 = ssub.s32 %s8, 2
      // Predicated region
      $region37: #{inv_conv2d_forward.1} parent=35 // pred_check
        %p290 = pneg %p100
      $region38: #{inv_conv2d_forward.1} parent=35 // pred_check_branch
        %292 = sbr.rel (%p290) target = $region40
      $region39: #{inv_conv2d_forward.1} parent=35 // pred_region
        %s293 = smul.u32 2, %s20
        %p294 = scmp.lt.s32.totalorder %s19, 1
        %s295 = scalar_select %p294, %s19, 1
        %p296 = scmp.lt.s32.totalorder %s293, 1
        %s297 = scalar_select %p296, %s293, 1
        %s298 = smul.addr %s295, 2
        %s299 = sadd.s32 %s297, %s298
        %s300 = smul.addr %s299, 4
        %s301 = scalar_lea.vmem %s2, %s300
      $region40: #{inv_conv2d_forward.1} parent=35 // pred_fallthru
        _
    $region36: #{inv_conv2d_forward.1} parent=5 // pred_fallthru
      _
  $region6: #{inv_conv2d_forward.1} parent=0 // loop_footer
    %s12 = sadd.s32 1, %s8
  $region7: #{inv_conv2d_forward.1} parent=0 // loop_footer_branch
    %7 = sbr.rel target = $region3
  $region8: #{inv_conv2d_forward.1} parent=0 // loop_exit
    _

</llo_original>
